<compile_context>
chip_gen: v6e
topology: v6e:2x2x1
jax: 0.10.0
libtpu: 0.0.40
codegen_flags: <defaults>
</compile_context>

<pallas_src>
import functools

import jax
import jax.numpy as jnp
from jax import lax
from jax.experimental import pallas as pl
from jax.experimental.pallas import tpu as pltpu

# Synthetic (small) feature cardinalities, mimicking OGB atom/bond encoders.
ATOM_FEATURE_DIMS = [16, 4, 8, 8, 8, 4, 4, 2, 2]   # 9 atom features
BOND_FEATURE_DIMS = [4, 4, 2]                      # 3 bond features
BN_EPS = 1e-5


# ---------------------------------------------------------------------------
# Fused Pallas kernel: all GIN layers, one grid step per layer.
#   per layer l (edges pre-sorted by destination, CSR-style seg offsets):
#     pre[d] = (1+eps_l) * h[d] + sum_{e in seg(d)} relu( h[src[e]] + eemb[l,e] )
#     h1     = relu( pre @ W1'_l + b1'_l )     (BN + bias folded into W1', b1')
#     h2     = h1 @ W2'_l + b2'_l              (per-layer BN folded into W2', b2')
#     h      = relu(h2)  if l != last else h2  (dropout = identity, eval mode)
#     h     += h_prev    if residual
# ---------------------------------------------------------------------------
def fused_gin_kernel(src_ref, seg_ref,                       # scalar prefetch (SMEM)
                     x0_hbm, eemb_ref, epsp1_ref,            # inputs
                     w1_ref, b1_ref, w2_ref, b2_ref,
                     out_ref,                                # output [N, D]
                     h_scr, pre_scr, eemb_f32, sum_scr, dma_sem,   # scratch
                     *, num_nodes, residual, jk_sum):
    l = pl.program_id(0)
    num_l = pl.num_programs(0)
    D = h_scr.shape[1]

    # --- layer 0: DMA the atom-encoder output HBM -> persistent h scratch ----
    @pl.when(l == 0)
    def _():
        cp = pltpu.make_async_copy(x0_hbm, h_scr, dma_sem)
        cp.start()
        cp.wait()
        if jk_sum:
            sum_scr[...] = h_scr[...]            # JK='sum' starts from h0

    # Stage this layer's edge embeddings (bf16 in HBM) to f32 once; per-edge
    # dynamic row slicing then happens on a 32-bit layout.
    eemb_f32[...] = eemb_ref[...].astype(jnp.float32)

    # --- message passing: dst-sorted segment accumulation --------------------
    # One vreg-carried accumulation per destination row; ONE store per row;
    # (1+eps)*h folded into the same store.  No VMEM read-modify-write chain.
    scale = epsp1_ref[l]
    zero_row = jnp.zeros((1, D), jnp.float32)

    @pl.loop(0, num_nodes)
    def _(d):
        start = seg_ref[d]
        end = seg_ref[d + 1]

        def edge_body(e, acc_row):
            s = src_ref[e]                                   # SMEM scalar read
            msg = h_scr[pl.ds(s, 1), :] + eemb_f32[pl.ds(e, 1), :]
            return acc_row + jnp.maximum(msg, 0.0)

        seg_sum = lax.fori_loop(start, end, edge_body, zero_row)
        pre_scr[pl.ds(d, 1), :] = scale * h_scr[pl.ds(d, 1), :] + seg_sum

    # --- MLP (BN + bias folded into W', b'); bf16 operands, f32 accumulation -
    pre = pre_scr[...]
    h1 = jnp.dot(pre.astype(jnp.bfloat16), w1_ref[...],
                 preferred_element_type=jnp.float32) + b1_ref[...]
    h1 = jnp.maximum(h1, 0.0)
    h2 = jnp.dot(h1.astype(jnp.bfloat16), w2_ref[...],
                 preferred_element_type=jnp.float32) + b2_ref[...]

    # --- per-layer epilogue: scalar-predicated, no [N,D] select pass ---------
    @pl.when(l != num_l - 1)
    def _():
        h_new = jnp.maximum(h2, 0.0)             # ReLU (dropout identity, eval)
        if residual:
            h_new = h_new + h_scr[...]
        if jk_sum:
            sum_scr[...] = sum_scr[...] + h_new
        h_scr[...] = h_new

    @pl.when(l == num_l - 1)
    def _():
        h_new = h2                               # no ReLU on the last layer
        if residual:
            h_new = h_new + h_scr[...]
        if jk_sum:
            out_ref[...] = sum_scr[...] + h_new
        else:
            out_ref[...] = h_new


def gin_layers_pallas(h0, eemb_sorted, src_sorted, seg_off, epsp1,
                      w1, b1, w2, b2, *, residual, jk_sum):
    """All GIN layers in one fused pallas_call. Returns node representation [N, D]."""
    L, E, D = eemb_sorted.shape
    N = h0.shape[0]

    kernel = functools.partial(fused_gin_kernel, num_nodes=N,
                               residual=residual, jk_sum=jk_sum)

    grid_spec = pltpu.PrefetchScalarGridSpec(
        num_scalar_prefetch=2,                               # src_sorted, seg_off -> SMEM
        grid=(L,),
        in_specs=[
            # initial node embeddings stay in HBM; DMA'd once at layer 0
            pl.BlockSpec(memory_space=pl.ANY),
            # per-layer edge embeddings [L, E, D] (bf16) -> (E, D) for layer l
            pl.BlockSpec((None, E, D), lambda l, s, g: (l, 0, 0)),
            # (1 + eps) per layer, tiny scalar array in SMEM
            pl.BlockSpec(memory_space=pltpu.MemorySpace.SMEM),
            # per-layer MLP weights (BN + bias folded in, bf16) / f32 biases
            pl.BlockSpec((None, D, D), lambda l, s, g: (l, 0, 0)),
            pl.BlockSpec((None, 1, D), lambda l, s, g: (l, 0, 0)),
            pl.BlockSpec((None, D, D), lambda l, s, g: (l, 0, 0)),
            pl.BlockSpec((None, 1, D), lambda l, s, g: (l, 0, 0)),
        ],
        # layer-invariant (N, D) output block: written only on the last layer
        out_specs=pl.BlockSpec((N, D), lambda l, s, g: (0, 0)),
        scratch_shapes=[
            pltpu.VMEM((N, D), jnp.float32),     # h   (persists across layers)
            pltpu.VMEM((N, D), jnp.float32),     # pre (aggregation result)
            pltpu.VMEM((E, D), jnp.float32),     # f32-staged edge embeddings
            pltpu.VMEM((N, D), jnp.float32),     # JK='sum' accumulator
            pltpu.SemaphoreType.DMA,             # x0 -> h init copy
        ],
    )

    # Explicit VMEM budget (v5e default scoped limit is only 16 MiB).
    vmem_bytes = (4 * N * D * 4                  # h, pre, sum scratch + out block
                  + E * D * 4                    # staged f32 eemb scratch
                  + 2 * E * D * 2                # eemb (bf16, double-buffered)
                  + 2 * 2 * D * D * 2            # w1, w2 (bf16, double-buffered)
                  + 2 * 2 * D * 4)               # b1, b2
    vmem_limit = min(64 * 1024 * 1024,
                     max(2 * vmem_bytes + (1 << 20), 32 * 1024 * 1024))

    return pl.pallas_call(
        kernel,
        out_shape=jax.ShapeDtypeStruct((N, D), jnp.float32),
        grid_spec=grid_spec,
        compiler_params=pltpu.CompilerParams(
            dimension_semantics=("arbitrary",),              # layers are sequential
            vmem_limit_bytes=vmem_limit),
    )(src_sorted, seg_off, h0, eemb_sorted, epsp1, w1, b1, w2, b2)


# ---------------------------------------------------------------------------
# Deterministic parameter initialization (synthetic, not a checkpoint load)
# with eval-mode BatchNorm + bias folded into the Linear weights.
# ---------------------------------------------------------------------------
def _fold_bn(w, b, gamma, beta, running_mean, running_var):
    # BN(x @ W + b) = x @ (W * scale) + ((b - mean) * scale + beta)
    scale = gamma / jnp.sqrt(running_var + BN_EPS)
    w_f = w * scale[None, :]
    b_f = (b - running_mean) * scale + beta
    return w_f, b_f


def init_params(key, num_layers, emb_dim):
    params = {"atom_emb": [], "layers": []}
    for card in ATOM_FEATURE_DIMS:
        key, k = jax.random.split(key)
        params["atom_emb"].append(0.1 * jax.random.normal(k, (card, emb_dim), jnp.float32))

    ones = jnp.ones((emb_dim,), jnp.float32)
    zeros = jnp.zeros((emb_dim,), jnp.float32)

    for _ in range(num_layers):
        lp = {}
        lp["bond_emb"] = []
        for card in BOND_FEATURE_DIMS:
            key, k = jax.random.split(key)
            lp["bond_emb"].append(0.1 * jax.random.normal(k, (card, emb_dim), jnp.float32))
        lp["eps"] = jnp.zeros((), jnp.float32)               # torch GINConv init
        key, k1, k2, k3, k4 = jax.random.split(key, 5)
        w1 = 0.1 * jax.random.normal(k1, (emb_dim, emb_dim), jnp.float32)
        b1 = 0.01 * jax.random.normal(k2, (emb_dim,), jnp.float32)
        w2 = 0.1 * jax.random.normal(k3, (emb_dim, emb_dim), jnp.float32)
        b2 = 0.01 * jax.random.normal(k4, (emb_dim,), jnp.float32)
        # Fold BN-inside-the-MLP into (w1, b1) and the per-layer BN into (w2, b2).
        # Default BN init: gamma=1, beta=0, running mean=0, running var=1.
        lp["w1"], lp["b1"] = _fold_bn(w1, b1, ones, zeros, zeros, ones)
        lp["w2"], lp["b2"] = _fold_bn(w2, b2, ones, zeros, zeros, ones)
        params["layers"].append(lp)
    return params


# ---------------------------------------------------------------------------
# Forward pass (embedding lookups / edge sorting are JAX glue; everything else
# is the fused Pallas kernel)
# ---------------------------------------------------------------------------
def gin_node_embedding_forward(params, x, edge_index, edge_attr,
                               num_layers, JK="last", residual=False):
    if num_layers < 2:
        raise ValueError("Number of GNN layers must be greater than 1.")
    if JK not in ("last", "sum"):
        raise ValueError(f"unknown JK mode: {JK}")

    layers = params["layers"]
    num_nodes = x.shape[0]

    # AtomEncoder: sum of per-feature embedding lookups.
    h0 = sum(params["atom_emb"][i][x[:, i]]
             for i in range(len(ATOM_FEATURE_DIMS))).astype(jnp.float32)

    # BondEncoder per layer, stacked -> [L, E, D].
    eemb_all = jnp.stack([
        sum(layers[l]["bond_emb"][i][edge_attr[:, i]]
            for i in range(len(BOND_FEATURE_DIMS)))
        for l in range(num_layers)], axis=0).astype(jnp.float32)

    src = edge_index[0].astype(jnp.int32)
    dst = edge_index[1].astype(jnp.int32)

    # Sort edges by destination and build CSR-style segment offsets so the
    # kernel can do vreg-resident per-destination segment accumulation.
    order = jnp.argsort(dst)
    src_sorted = src[order]
    eemb_sorted = eemb_all[:, order, :].astype(jnp.bfloat16)   # bf16 HBM storage
    counts = jnp.bincount(dst, length=num_nodes)
    seg_off = jnp.concatenate(
        [jnp.zeros((1,), counts.dtype), jnp.cumsum(counts)]).astype(jnp.int32)

    # Per-layer (BN + bias folded) weights, stacked on a leading layer axis.
    w1 = jnp.stack([lp["w1"] for lp in layers]).astype(jnp.bfloat16)      # [L, D, D]
    b1 = jnp.stack([lp["b1"] for lp in layers])[:, None, :].astype(jnp.float32)
    w2 = jnp.stack([lp["w2"] for lp in layers]).astype(jnp.bfloat16)      # [L, D, D]
    b2 = jnp.stack([lp["b2"] for lp in layers])[:, None, :].astype(jnp.float32)
    epsp1 = jnp.stack([1.0 + lp["eps"] for lp in layers]).astype(jnp.float32)

    return gin_layers_pallas(h0, eemb_sorted, src_sorted, seg_off, epsp1,
                             w1, b1, w2, b2,
                             residual=residual, jk_sum=(JK == "sum"))


# ---------------------------------------------------------------------------
# Pure-JAX reference (same folded eval-mode params), for a tolerance check.
# ---------------------------------------------------------------------------
def gin_node_embedding_reference(params, x, edge_index, edge_attr,
                                 num_layers, JK="last", residual=False):
    layers = params["layers"]
    N = x.shape[0]
    h0 = sum(params["atom_emb"][i][x[:, i]]
             for i in range(len(ATOM_FEATURE_DIMS))).astype(jnp.float32)
    src, dst = edge_index[0], edge_index[1]
    h_list = [h0]
    for l in range(num_layers):
        lp = layers[l]
        eemb = sum(lp["bond_emb"][i][edge_attr[:, i]]
                   for i in range(len(BOND_FEATURE_DIMS))).astype(jnp.float32)
        msg = jax.nn.relu(h_list[l][src] + eemb)
        agg = jnp.zeros((N, h0.shape[1]), jnp.float32).at[dst].add(msg)
        pre = (1.0 + lp["eps"]) * h_list[l] + agg
        h1 = jax.nn.relu(pre @ lp["w1"] + lp["b1"])
        h2 = h1 @ lp["w2"] + lp["b2"]
        hl = h2 if l == num_layers - 1 else jax.nn.relu(h2)
        if residual:
            hl = hl + h_list[l]
        h_list.append(hl)
    if JK == "last":
        return h_list[-1]
    return sum(h_list)


if __name__ == "__main__":
    num_layers = 2
    emb_dim = 128          # lane-dense (multiple of 128)
    num_nodes = 8
    num_edges = 16

    key = jax.random.PRNGKey(0)
    key, kx, ke, ka, kp = jax.random.split(key, 5)

    x = jnp.stack(
        [jax.random.randint(jax.random.fold_in(kx, i), (num_nodes,), 0, c)
         for i, c in enumerate(ATOM_FEATURE_DIMS)], axis=1).astype(jnp.int32)
    edge_index = jax.random.randint(ke, (2, num_edges), 0, num_nodes).astype(jnp.int32)
    edge_attr = jnp.stack(
        [jax.random.randint(jax.random.fold_in(ka, i), (num_edges,), 0, c)
         for i, c in enumerate(BOND_FEATURE_DIMS)], axis=1).astype(jnp.int32)

    params = init_params(kp, num_layers, emb_dim)

    node_repr = gin_node_embedding_forward(
        params, x, edge_index, edge_attr, num_layers, JK="last", residual=False)
    node_repr = jax.block_until_ready(node_repr)

    assert node_repr.shape == (num_nodes, emb_dim)
    assert node_repr.dtype == jnp.float32

    ref = jax.block_until_ready(gin_node_embedding_reference(
        params, x, edge_index, edge_attr, num_layers, JK="last", residual=False))
    max_err = float(jnp.max(jnp.abs(node_repr - ref)))
    assert jnp.allclose(node_repr, ref, atol=1e-1, rtol=1e-1), max_err

    print("KERNEL_OK")
</pallas_src>

<mosaic_0001>
module attributes {stable_mosaic.version = 11 : i64} {
  func.func @fused_gin_kernel(%arg0: i32, %arg1: memref<16xi32, #tpu.memory_space<smem>>, %arg2: memref<9xi32, #tpu.memory_space<smem>>, %arg3: memref<8x128xf32, #tpu.memory_space<any>>, %arg4: memref<1x16x128xbf16, #tpu.memory_space<vmem>>, %arg5: memref<2xf32, #tpu.memory_space<smem>>, %arg6: memref<1x128x128xbf16, #tpu.memory_space<vmem>>, %arg7: memref<1x1x128xf32, #tpu.memory_space<vmem>>, %arg8: memref<1x128x128xbf16, #tpu.memory_space<vmem>>, %arg9: memref<1x1x128xf32, #tpu.memory_space<vmem>>, %arg10: memref<8x128xf32, #tpu.memory_space<vmem>>, %arg11: memref<8x128xf32, #tpu.memory_space<vmem>>, %arg12: memref<8x128xf32, #tpu.memory_space<vmem>>, %arg13: memref<16x128xf32, #tpu.memory_space<vmem>>, %arg14: memref<8x128xf32, #tpu.memory_space<vmem>>, %arg15: memref<!tpu.dma_semaphore, #tpu.memory_space<semaphore_mem>>) attributes {dimension_semantics = [#tpu.dimension_semantics<arbitrary>], iteration_bounds = array<i64: 2>, scalar_prefetch = 2 : i64, scratch_operands = 5 : i64, tpu.core_type = #tpu.core_type<tc>, window_params = [{}, {transform_indices = @transform_1, window_bounds = array<i64: 1, 16, 128>}, {transform_indices = @transform_2, window_bounds = array<i64: 2>}, {transform_indices = @transform_3, window_bounds = array<i64: 1, 128, 128>}, {transform_indices = @transform_4, window_bounds = array<i64: 1, 1, 128>}, {transform_indices = @transform_5, window_bounds = array<i64: 1, 128, 128>}, {transform_indices = @transform_6, window_bounds = array<i64: 1, 1, 128>}, {pipeline_mode = #tpu.pipeline_mode<synchronous>, transform_indices = @transform_7, window_bounds = array<i64: 8, 128>}]} {
    %c0_i32 = arith.constant 0 : i32
    %0 = arith.cmpi eq, %arg0, %c0_i32 : i32
    %1 = arith.extui %0 : i1 to i32
    %c0_i32_0 = arith.constant 0 : i32
    %2 = arith.cmpi ne, %1, %c0_i32_0 : i32
    scf.if %2 {
      tpu.enqueue_dma source(%arg3 : memref<8x128xf32, #tpu.memory_space<any>>) target(%arg11 : memref<8x128xf32, #tpu.memory_space<vmem>>) target_semaphore(%arg15 : memref<!tpu.dma_semaphore, #tpu.memory_space<semaphore_mem>>)
      tpu.wait_dma2 semaphore(%arg15 : memref<!tpu.dma_semaphore, #tpu.memory_space<semaphore_mem>>) src(%arg3 : memref<8x128xf32, #tpu.memory_space<any>>) dst(%arg11 : memref<8x128xf32, #tpu.memory_space<vmem>>)
    } else {
    }
    %c0 = arith.constant 0 : index
    %c0_1 = arith.constant 0 : index
    %c0_2 = arith.constant 0 : index
    %3 = vector.load %arg4[%c0, %c0_1, %c0_2] : memref<1x16x128xbf16, #tpu.memory_space<vmem>>, vector<1x16x128xbf16>
    %4 = vector.shape_cast %3 : vector<1x16x128xbf16> to vector<16x128xbf16>
    %5 = arith.extf %4 : vector<16x128xbf16> to vector<16x128xf32>
    %c0_3 = arith.constant 0 : index
    %c0_4 = arith.constant 0 : index
    %6 = vector.load %arg13[%c0_3, %c0_4] : memref<16x128xf32, #tpu.memory_space<vmem>>, vector<16x128xf32>
    tpu.vector_store %arg13[%c0_3, %c0_4], %5 {strides = array<i32>} : memref<16x128xf32, #tpu.memory_space<vmem>>, vector<16x128xf32>,
    %7 = arith.index_cast %arg0 : i32 to index
    %8 = memref.load %arg5[%7] : memref<2xf32, #tpu.memory_space<smem>>
    %cst = arith.constant 0.000000e+00 : f32
    %9 = vector.broadcast %cst : f32 to vector<1x128xf32>
    %c0_i32_5 = arith.constant 0 : i32
    %c8_i32 = arith.constant 8 : i32
    %10 = arith.addi %c0_i32_5, %c8_i32 : i32
    %c1_i32 = arith.constant 1 : i32
    scf.for %arg16 = %c0_i32_5 to %10 step %c1_i32  : i32 {
      %c1_i32_28 = arith.constant 1 : i32
      %36 = arith.muli %arg16, %c1_i32_28 : i32
      %c0_i32_29 = arith.constant 0 : i32
      %37 = arith.addi %c0_i32_29, %36 : i32
      %38 = arith.index_cast %37 : i32 to index
      %39 = memref.load %arg2[%38] : memref<9xi32, #tpu.memory_space<smem>>
      %c1_i32_30 = arith.constant 1 : i32
      %40 = arith.addi %37, %c1_i32_30 : i32
      %41 = arith.index_cast %40 : i32 to index
      %42 = memref.load %arg2[%41] : memref<9xi32, #tpu.memory_space<smem>>
      %43 = arith.subi %42, %39 : i32
      %44 = arith.addi %39, %43 : i32
      %c1_i32_31 = arith.constant 1 : i32
      %45 = scf.for %arg17 = %39 to %44 step %c1_i32_31 iter_args(%arg18 = %9) -> (vector<1x128xf32>)  : i32 {
        %53 = arith.index_cast %arg17 : i32 to index
        %54 = memref.load %arg1[%53] : memref<16xi32, #tpu.memory_space<smem>>
        %55 = arith.index_cast %54 : i32 to index
        %c0_34 = arith.constant 0 : index
        %56 = vector.load %arg11[%55, %c0_34] : memref<8x128xf32, #tpu.memory_space<vmem>>, vector<1x128xf32>
        %57 = arith.index_cast %arg17 : i32 to index
        %c0_35 = arith.constant 0 : index
        %58 = vector.load %arg13[%57, %c0_35] : memref<16x128xf32, #tpu.memory_space<vmem>>, vector<1x128xf32>
        %59 = arith.addf %56, %58 : vector<1x128xf32>
        %cst_36 = arith.constant 0.000000e+00 : f32
        %60 = vector.broadcast %cst_36 : f32 to vector<1x128xf32>
        %61 = arith.maximumf %59, %60 : vector<1x128xf32>
        %62 = arith.addf %arg18, %61 : vector<1x128xf32>
        scf.yield %62 : vector<1x128xf32>
      }
      %46 = arith.index_cast %37 : i32 to index
      %c0_32 = arith.constant 0 : index
      %47 = vector.load %arg11[%46, %c0_32] : memref<8x128xf32, #tpu.memory_space<vmem>>, vector<1x128xf32>
      %48 = vector.broadcast %8 : f32 to vector<1x128xf32>
      %49 = arith.mulf %48, %47 : vector<1x128xf32>
      %50 = arith.addf %49, %45 : vector<1x128xf32>
      %51 = arith.index_cast %37 : i32 to index
      %c0_33 = arith.constant 0 : index
      %52 = vector.load %arg12[%51, %c0_33] : memref<8x128xf32, #tpu.memory_space<vmem>>, vector<1x128xf32>
      tpu.vector_store %arg12[%51, %c0_33], %50 {strides = array<i32>} : memref<8x128xf32, #tpu.memory_space<vmem>>, vector<1x128xf32>,
    }
    %c8_i32_6 = arith.constant 8 : i32
    %c0_7 = arith.constant 0 : index
    %c0_8 = arith.constant 0 : index
    %11 = vector.load %arg12[%c0_7, %c0_8] : memref<8x128xf32, #tpu.memory_space<vmem>>, vector<8x128xf32>
    %12 = arith.truncf %11 : vector<8x128xf32> to vector<8x128xbf16>
    %c0_9 = arith.constant 0 : index
    %c0_10 = arith.constant 0 : index
    %c0_11 = arith.constant 0 : index
    %13 = vector.load %arg6[%c0_9, %c0_10, %c0_11] : memref<1x128x128xbf16, #tpu.memory_space<vmem>>, vector<1x128x128xbf16>
    %14 = vector.shape_cast %13 : vector<1x128x128xbf16> to vector<128x128xbf16>
    %cst_12 = arith.constant dense<0.000000e+00> : vector<8x128xf32>
    %15 = tpu.matmul %12, %14, %cst_12 {dimension_numbers = #tpu.dot_dimension_numbers<[1], [0], [0], [1], [0, 0, 1, 1], [], []>} : vector<8x128xbf16>, vector<128x128xbf16>, vector<8x128xf32> -> vector<8x128xf32>
    %c0_13 = arith.constant 0 : index
    %c0_14 = arith.constant 0 : index
    %c0_15 = arith.constant 0 : index
    %16 = vector.load %arg7[%c0_13, %c0_14, %c0_15] : memref<1x1x128xf32, #tpu.memory_space<vmem>>, vector<1x1x128xf32>
    %17 = vector.shape_cast %16 : vector<1x1x128xf32> to vector<1x128xf32>
    %18 = vector.broadcast %17 : vector<1x128xf32> to vector<8x128xf32>
    %19 = arith.addf %15, %18 : vector<8x128xf32>
    %cst_16 = arith.constant 0.000000e+00 : f32
    %20 = vector.broadcast %cst_16 : f32 to vector<8x128xf32>
    %21 = arith.maximumf %19, %20 : vector<8x128xf32>
    %22 = arith.truncf %21 : vector<8x128xf32> to vector<8x128xbf16>
    %c0_17 = arith.constant 0 : index
    %c0_18 = arith.constant 0 : index
    %c0_19 = arith.constant 0 : index
    %23 = vector.load %arg8[%c0_17, %c0_18, %c0_19] : memref<1x128x128xbf16, #tpu.memory_space<vmem>>, vector<1x128x128xbf16>
    %24 = vector.shape_cast %23 : vector<1x128x128xbf16> to vector<128x128xbf16>
    %cst_20 = arith.constant dense<0.000000e+00> : vector<8x128xf32>
    %25 = tpu.matmul %22, %24, %cst_20 {dimension_numbers = #tpu.dot_dimension_numbers<[1], [0], [0], [1], [0, 0, 1, 1], [], []>} : vector<8x128xbf16>, vector<128x128xbf16>, vector<8x128xf32> -> vector<8x128xf32>
    %c0_21 = arith.constant 0 : index
    %c0_22 = arith.constant 0 : index
    %c0_23 = arith.constant 0 : index
    %26 = vector.load %arg9[%c0_21, %c0_22, %c0_23] : memref<1x1x128xf32, #tpu.memory_space<vmem>>, vector<1x1x128xf32>
    %27 = vector.shape_cast %26 : vector<1x1x128xf32> to vector<1x128xf32>
    %28 = vector.broadcast %27 : vector<1x128xf32> to vector<8x128xf32>
    %29 = arith.addf %25, %28 : vector<8x128xf32>
    %c1_i32_24 = arith.constant 1 : i32
    %30 = arith.cmpi ne, %arg0, %c1_i32_24 : i32
    %31 = arith.extui %30 : i1 to i32
    %c0_i32_25 = arith.constant 0 : i32
    %32 = arith.cmpi ne, %31, %c0_i32_25 : i32
    scf.if %32 {
      %cst_28 = arith.constant 0.000000e+00 : f32
      %36 = vector.broadcast %cst_28 : f32 to vector<8x128xf32>
      %37 = arith.maximumf %29, %36 : vector<8x128xf32>
      %c0_29 = arith.constant 0 : index
      %c0_30 = arith.constant 0 : index
      %38 = vector.load %arg11[%c0_29, %c0_30] : memref<8x128xf32, #tpu.memory_space<vmem>>, vector<8x128xf32>
      tpu.vector_store %arg11[%c0_29, %c0_30], %37 {strides = array<i32>} : memref<8x128xf32, #tpu.memory_space<vmem>>, vector<8x128xf32>,
    } else {
    }
    %c1_i32_26 = arith.constant 1 : i32
    %33 = arith.cmpi eq, %arg0, %c1_i32_26 : i32
    %34 = arith.extui %33 : i1 to i32
    %c0_i32_27 = arith.constant 0 : i32
    %35 = arith.cmpi ne, %34, %c0_i32_27 : i32
    scf.if %35 {
      %c0_28 = arith.constant 0 : index
      %c0_29 = arith.constant 0 : index
      %36 = vector.load %arg10[%c0_28, %c0_29] : memref<8x128xf32, #tpu.memory_space<vmem>>, vector<8x128xf32>
      tpu.vector_store %arg10[%c0_28, %c0_29], %29 {strides = array<i32>} : memref<8x128xf32, #tpu.memory_space<vmem>>, vector<8x128xf32>,
    } else {
    }
    return
  }
  func.func @transform_1(%arg0: i32, %arg1: memref<16xi32, #tpu.memory_space<smem>>, %arg2: memref<9xi32, #tpu.memory_space<smem>>) -> (i32, i32, i32) {
    %c0_i32 = arith.constant 0 : i32
    %c0_i32_0 = arith.constant 0 : i32
    %c0_i32_1 = arith.constant 0 : i32
    return %arg0, %c0_i32, %c0_i32_0 : i32, i32, i32
  }
  func.func @transform_2(%arg0: i32, %arg1: memref<16xi32, #tpu.memory_space<smem>>, %arg2: memref<9xi32, #tpu.memory_space<smem>>) -> i32 {
    %c0_i32 = arith.constant 0 : i32
    %c0_i32_0 = arith.constant 0 : i32
    return %c0_i32 : i32
  }
  func.func @transform_3(%arg0: i32, %arg1: memref<16xi32, #tpu.memory_space<smem>>, %arg2: memref<9xi32, #tpu.memory_space<smem>>) -> (i32, i32, i32) {
    %c0_i32 = arith.constant 0 : i32
    %c0_i32_0 = arith.constant 0 : i32
    %c0_i32_1 = arith.constant 0 : i32
    return %arg0, %c0_i32, %c0_i32_0 : i32, i32, i32
  }
  func.func @transform_4(%arg0: i32, %arg1: memref<16xi32, #tpu.memory_space<smem>>, %arg2: memref<9xi32, #tpu.memory_space<smem>>) -> (i32, i32, i32) {
    %c0_i32 = arith.constant 0 : i32
    %c0_i32_0 = arith.constant 0 : i32
    %c0_i32_1 = arith.constant 0 : i32
    return %arg0, %c0_i32, %c0_i32_0 : i32, i32, i32
  }
  func.func @transform_5(%arg0: i32, %arg1: memref<16xi32, #tpu.memory_space<smem>>, %arg2: memref<9xi32, #tpu.memory_space<smem>>) -> (i32, i32, i32) {
    %c0_i32 = arith.constant 0 : i32
    %c0_i32_0 = arith.constant 0 : i32
    %c0_i32_1 = arith.constant 0 : i32
    return %arg0, %c0_i32, %c0_i32_0 : i32, i32, i32
  }
  func.func @transform_6(%arg0: i32, %arg1: memref<16xi32, #tpu.memory_space<smem>>, %arg2: memref<9xi32, #tpu.memory_space<smem>>) -> (i32, i32, i32) {
    %c0_i32 = arith.constant 0 : i32
    %c0_i32_0 = arith.constant 0 : i32
    %c0_i32_1 = arith.constant 0 : i32
    return %arg0, %c0_i32, %c0_i32_0 : i32, i32, i32
  }
  func.func @transform_7(%arg0: i32, %arg1: memref<16xi32, #tpu.memory_space<smem>>, %arg2: memref<9xi32, #tpu.memory_space<smem>>) -> (i32, i32) {
    %c0_i32 = arith.constant 0 : i32
    %c0_i32_0 = arith.constant 0 : i32
    %c0_i32_1 = arith.constant 0 : i32
    return %c0_i32, %c0_i32_0 : i32, i32
  }
}

</mosaic_0001>

<llo_original>
// kernel: tpu_custom_call.1
$region0: #{tpu_custom_call.1}
  #allocation0 [shape = 'u32[]', space=smem, size = 0x4, offset = 0x4, fixed_abs, tag = 'smem constant byte address 0x4 - core index']
  #allocation1 [shape = 'u32[144,128]{1,0:T(1,128)}', space=vmem, size = 0x12000, scoped, tag = 'internal scratch']
  #allocation2 [shape = 'f32[8,128]{1,0:T(8,128)}', space=vmem, size = 0x1000, scoped, tag = 'scratch operand']
  #allocation3 [shape = 'f32[8,128]{1,0:T(8,128)}', space=vmem, size = 0x1000, scoped, tag = 'scratch operand']
  #allocation4 [shape = 'f32[16,128]{1,0:T(8,128)}', space=vmem, size = 0x2000, scoped, tag = 'scratch operand']
  #allocation5 [shape = 'f32[8,128]{1,0:T(8,128)}', space=vmem, size = 0x1000, scoped, tag = 'scratch operand']
  #allocation6 [shape = 's32[1]{0}', space=sflag, size = 0x4, scoped, tag = 'scratch operand']
  #allocation7 [shape = 's32[1]{0}', space=sflag, size = 0x4, scoped, tag = 'scoped memory for tpu_custom_call.1']
  #allocation8 [shape = 'u8[512]{0}', space=smem, size = 0x200, scoped, tag = 'prefetched SMEM operand 0']
  #allocation9 [shape = 'u8[512]{0}', space=smem, size = 0x200, scoped, tag = 'prefetched SMEM operand 1']
  #allocation19 [shape = 's32[]', space=sflag, size = 0x4, offset = 0, fixed_abs, tag = 'sflag constant byte address 0x0 - dummy sync flag']
  #allocation20 [shape = 's32[]', space=sflag, size = 0x4, offset = 0, fixed_abs, tag = 'sflag constant byte address 0x0 - dummy sync flag']
  #allocation21 [shape = 'u32[]', space=smem, size = 0x4, offset = 0x44, fixed_abs, tag = 'smem constant byte address 0x44 - assertion arg 0']
  #allocation22 [shape = 'u32[]', space=smem, size = 0x4, offset = 0x48, fixed_abs, tag = 'smem constant byte address 0x48 - assertion arg 1']
  %s0 = inlined_call_operand.hbm [shape: s32[16], index: 0, kind: input, shape index: {}]
  %s1 = inlined_call_operand.vmem [shape: s32[9], index: 1, kind: input, shape index: {}]
  %s2 = inlined_call_operand.hbm [shape: f32[8,128], index: 2, kind: input, shape index: {}]
  %s3 = inlined_call_operand.hbm [shape: bf16[2,16,128], index: 3, kind: input, shape index: {}]
  %s4 = inlined_call_operand.vmem [shape: f32[2], index: 4, kind: input, shape index: {}]
  %s5 = inlined_call_operand.hbm [shape: bf16[2,128,128], index: 5, kind: input, shape index: {}]
  %s6 = inlined_call_operand.vmem [shape: f32[2,1,128], index: 6, kind: input, shape index: {}]
  %s7 = inlined_call_operand.hbm [shape: bf16[2,128,128], index: 7, kind: input, shape index: {}]
  %s8 = inlined_call_operand.vmem [shape: f32[2,1,128], index: 8, kind: input, shape index: {}]
  %s9 = inlined_call_operand.hbm [shape: f32[8,128], index: 9, kind: output, shape index: {}]
  %s10 = sld [smem:[#allocation0]]
  $region103: #{tpu_custom_call.1} parent=0
    _
  %s12 = ssub.s32 1, %s10
  %s13 = scalar_select 0, %s12, %s10
  %15 = dma.hbm_to_smem %s0, 16, [#allocation8], [#allocation7]
  %s16 = sshll.u32 %s1, 4
  %s17 = int_to_ptr.vmem [resolvable:$true] %s16
  %19 = dma.vmem_to_smem %s17, 16, [#allocation9], [#allocation7]
  %20 = dma.done [#allocation7], 32
  %21 = sfence
  $region1: #{tpu_custom_call.1} parent=0
    #allocation10 [shape = 'u8[8192]{0}', space=vmem, size = 0x2000, scoped, tag = 'input window, operand 3']
    #allocation11 [shape = 's32[2]{0}', space=sflag, size = 0x8, scoped, tag = 'scoped memory for tpu_custom_call.1']
    #allocation12 [shape = 's32[2]{0}', space=sflag, size = 0x8, scoped, tag = 'scoped memory for tpu_custom_call.1']
    #allocation13 [shape = 's32[2]{0}', space=sflag, size = 0x8, scoped, tag = 'scoped memory for tpu_custom_call.1']
    #allocation14 [shape = 'u8[512]{0}', space=smem, size = 0x200, scoped, tag = 'input window, operand 4, single buffered']
    #allocation15 [shape = 'u8[65536]{0}', space=vmem, size = 0x10000, scoped, tag = 'input window, operand 5']
    #allocation16 [shape = 's32[2]{0}', space=sflag, size = 0x8, scoped, tag = 'scoped memory for tpu_custom_call.1']
    #allocation17 [shape = 'u8[65536]{0}', space=vmem, size = 0x10000, scoped, tag = 'input window, operand 7']
    #allocation18 [shape = 'u8[4096]{0}', space=vmem, size = 0x1000, scoped, tag = 'output window, operand 0, single buffered']
    %22 = vsyncpa [#allocation11], 0
    %s23 = scalar_lea.sflag [#allocation11], 1
    %24 = vsyncpa %s23, 0
    %25 = vsyncpa [#allocation13], 0
    %26 = vsyncpa [#allocation16], 0
    %s27 = scalar_lea.sflag [#allocation16], 1
    %28 = vsyncpa %s27, 0
    %29 = vsyncpa [#allocation12], 0
    loop: start=0, step=1, limit=4
    $region2: #{tpu_custom_call.1} parent=1 // loop_pre_header
      _
    $region3: #{tpu_custom_call.1} parent=1 // loop_header
      %s31 = sphi 0, %s35
      %p32 = scmp.ge.s32.totalorder %s31, 4
      %s41 = sphi 0, %s43
      %s44 = sphi 0, %s41
      %s45 = sphi 0, %s44
      %s61 = sphi 0, %s45
      %s65 = sphi 0, %s65
      %s67 = sphi 0, %s65
      %s68 = sphi 0, %s67
      %s82 = sphi 0, %s68
      %s88 = sphi 0, %s90
      %s91 = sphi 0, %s88
      %s92 = sphi 0, %s91
      %s108 = sphi 0, %s92
      %s114 = sphi 0, %s116
      %s117 = sphi 0, %s114
      %s118 = sphi 0, %s117
      %s134 = sphi 0, %s118
      %s140 = sphi 0, %s142
      %s143 = sphi 0, %s140
      %s144 = sphi 0, %s143
      %s160 = sphi 0, %s144
      %s166 = sphi 0, %s168
      %s169 = sphi 0, %s166
      %s170 = sphi 0, %s169
      %s186 = sphi 0, %s170
      %s190 = sphi 0, %s190
      %s192 = sphi 0, %s190
      %s193 = sphi 0, %s192
      %s207 = sphi 0, %s193
    $region4: #{tpu_custom_call.1} parent=1 // loop_header_branch
      %34 = sbr.rel (%p32) target = $region8
    $region5: #{tpu_custom_call.1} parent=1 // loop_body
      %s36 = ssub.s32 %s31, 1
      %s37 = ssub.s32 %s31, 2
      %s38 = sadd.s32 %s31, 1
      %s39 = ssub.s32 %s31, %s38
      %p40 = scmp.eq.s32.totalorder %s39, 0
      %s42 = sadd.s32 %s41, 1
      %s43 = scalar_select %p40, %s41, %s42
      %p46 = pneg %p40
      %p47 = scmp.eq.s32.totalorder %s31, 1
      %p48 = por %p46, %p47
      %p49 = scmp.ne.s32.totalorder %s41, %s44
      %p50 = scmp.eq.s32.totalorder %s31, 0
      %p51 = por %p49, %p50
      %p52 = scmp.ne.s32.totalorder %s41, %s44
      %p53 = scmp.eq.s32.totalorder %s36, 1
      %p54 = por %p52, %p53
      %p55 = scmp.ne.s32.totalorder %s44, %s45
      %p56 = scmp.eq.s32.totalorder %s36, 0
      %p57 = por %p55, %p56
      %p58 = scmp.ne.s32.totalorder %s44, %s45
      %p59 = scmp.eq.s32.totalorder %s37, 1
      %p60 = por %p58, %p59
      %p62 = scmp.ne.s32.totalorder %s45, %s61
      %p63 = scmp.eq.s32.totalorder %s37, 0
      %p64 = por %p62, %p63
      %s66 = sadd.s32 %s65, 1
      %p69 = scmp.eq.s32.totalorder %s31, 1
      %p70 = scmp.ne.s32.totalorder %s65, %s67
      %p71 = scmp.eq.s32.totalorder %s31, 0
      %p72 = por %p70, %p71
      %p73 = scmp.ne.s32.totalorder %s65, %s67
      %p74 = scmp.eq.s32.totalorder %s36, 1
      %p75 = por %p73, %p74
      %p76 = scmp.ne.s32.totalorder %s67, %s68
      %p77 = scmp.eq.s32.totalorder %s36, 0
      %p78 = por %p76, %p77
      %p79 = scmp.ne.s32.totalorder %s67, %s68
      %p80 = scmp.eq.s32.totalorder %s37, 1
      %p81 = por %p79, %p80
      %p83 = scmp.ne.s32.totalorder %s68, %s82
      %p84 = scmp.eq.s32.totalorder %s37, 0
      %p85 = por %p83, %p84
      %s86 = ssub.s32 %s31, %s38
      %p87 = scmp.eq.s32.totalorder %s86, 0
      %s89 = sadd.s32 %s88, 1
      %s90 = scalar_select %p87, %s88, %s89
      %p93 = pneg %p87
      %p94 = scmp.eq.s32.totalorder %s31, 1
      %p95 = por %p93, %p94
      %p96 = scmp.ne.s32.totalorder %s88, %s91
      %p97 = scmp.eq.s32.totalorder %s31, 0
      %p98 = por %p96, %p97
      %p99 = scmp.ne.s32.totalorder %s88, %s91
      %p100 = scmp.eq.s32.totalorder %s36, 1
      %p101 = por %p99, %p100
      %p102 = scmp.ne.s32.totalorder %s91, %s92
      %p103 = scmp.eq.s32.totalorder %s36, 0
      %p104 = por %p102, %p103
      %p105 = scmp.ne.s32.totalorder %s91, %s92
      %p106 = scmp.eq.s32.totalorder %s37, 1
      %p107 = por %p105, %p106
      %p109 = scmp.ne.s32.totalorder %s92, %s108
      %p110 = scmp.eq.s32.totalorder %s37, 0
      %p111 = por %p109, %p110
      %s112 = ssub.s32 %s31, %s38
      %p113 = scmp.eq.s32.totalorder %s112, 0
      %s115 = sadd.s32 %s114, 1
      %s116 = scalar_select %p113, %s114, %s115
      %p119 = pneg %p113
      %p120 = scmp.eq.s32.totalorder %s31, 1
      %p121 = por %p119, %p120
      %p122 = scmp.ne.s32.totalorder %s114, %s117
      %p123 = scmp.eq.s32.totalorder %s31, 0
      %p124 = por %p122, %p123
      %p125 = scmp.ne.s32.totalorder %s114, %s117
      %p126 = scmp.eq.s32.totalorder %s36, 1
      %p127 = por %p125, %p126
      %p128 = scmp.ne.s32.totalorder %s117, %s118
      %p129 = scmp.eq.s32.totalorder %s36, 0
      %p130 = por %p128, %p129
      %p131 = scmp.ne.s32.totalorder %s117, %s118
      %p132 = scmp.eq.s32.totalorder %s37, 1
      %p133 = por %p131, %p132
      %p135 = scmp.ne.s32.totalorder %s118, %s134
      %p136 = scmp.eq.s32.totalorder %s37, 0
      %p137 = por %p135, %p136
      %s138 = ssub.s32 %s31, %s38
      %p139 = scmp.eq.s32.totalorder %s138, 0
      %s141 = sadd.s32 %s140, 1
      %s142 = scalar_select %p139, %s140, %s141
      %p145 = pneg %p139
      %p146 = scmp.eq.s32.totalorder %s31, 1
      %p147 = por %p145, %p146
      %p148 = scmp.ne.s32.totalorder %s140, %s143
      %p149 = scmp.eq.s32.totalorder %s31, 0
      %p150 = por %p148, %p149
      %p151 = scmp.ne.s32.totalorder %s140, %s143
      %p152 = scmp.eq.s32.totalorder %s36, 1
      %p153 = por %p151, %p152
      %p154 = scmp.ne.s32.totalorder %s143, %s144
      %p155 = scmp.eq.s32.totalorder %s36, 0
      %p156 = por %p154, %p155
      %p157 = scmp.ne.s32.totalorder %s143, %s144
      %p158 = scmp.eq.s32.totalorder %s37, 1
      %p159 = por %p157, %p158
      %p161 = scmp.ne.s32.totalorder %s144, %s160
      %p162 = scmp.eq.s32.totalorder %s37, 0
      %p163 = por %p161, %p162
      %s164 = ssub.s32 %s31, %s38
      %p165 = scmp.eq.s32.totalorder %s164, 0
      %s167 = sadd.s32 %s166, 1
      %s168 = scalar_select %p165, %s166, %s167
      %p171 = pneg %p165
      %p172 = scmp.eq.s32.totalorder %s31, 1
      %p173 = por %p171, %p172
      %p174 = scmp.ne.s32.totalorder %s166, %s169
      %p175 = scmp.eq.s32.totalorder %s31, 0
      %p176 = por %p174, %p175
      %p177 = scmp.ne.s32.totalorder %s166, %s169
      %p178 = scmp.eq.s32.totalorder %s36, 1
      %p179 = por %p177, %p178
      %p180 = scmp.ne.s32.totalorder %s169, %s170
      %p181 = scmp.eq.s32.totalorder %s36, 0
      %p182 = por %p180, %p181
      %p183 = scmp.ne.s32.totalorder %s169, %s170
      %p184 = scmp.eq.s32.totalorder %s37, 1
      %p185 = por %p183, %p184
      %p187 = scmp.ne.s32.totalorder %s170, %s186
      %p188 = scmp.eq.s32.totalorder %s37, 0
      %p189 = por %p187, %p188
      %s191 = sadd.s32 %s190, 1
      %p194 = scmp.eq.s32.totalorder %s31, 1
      %p195 = scmp.ne.s32.totalorder %s190, %s192
      %p196 = scmp.eq.s32.totalorder %s31, 0
      %p197 = por %p195, %p196
      %p198 = scmp.ne.s32.totalorder %s190, %s192
      %p199 = scmp.eq.s32.totalorder %s36, 1
      %p200 = por %p198, %p199
      %p201 = scmp.ne.s32.totalorder %s192, %s193
      %p202 = scmp.eq.s32.totalorder %s36, 0
      %p203 = por %p201, %p202
      %p204 = scmp.ne.s32.totalorder %s192, %s193
      %p205 = scmp.eq.s32.totalorder %s37, 1
      %p206 = por %p204, %p205
      %p208 = scmp.ne.s32.totalorder %s193, %s207
      %p209 = scmp.eq.s32.totalorder %s37, 0
      %p210 = por %p208, %p209
      %p211 = scmp.le.s32.totalorder 1, %s31
      %p212 = scmp.lt.s32.totalorder %s31, 3
      %p213 = pnand %p211, %p212
      %p214 = pneg %p213
      // Predicated region
      $region9: #{tpu_custom_call.1} parent=5 // pred_check
        _
      $region10: #{tpu_custom_call.1} parent=5 // pred_check_branch
        %216 = sbr.rel (%p213) target = $region12
      $region11: #{tpu_custom_call.1} parent=5 // pred_region
        %s217 = ssub.s32 %s31, 1
        // Predicated region
        $region13: #{tpu_custom_call.1} parent=11 // pred_check
          %p218 = pneg %p78
        $region14: #{tpu_custom_call.1} parent=11 // pred_check_branch
          %220 = sbr.rel (%p218) target = $region16
        $region15: #{tpu_custom_call.1} parent=11 // pred_region
          %s222 = ssub.s32 16, 16
          %223 = vsyncadd [#allocation13], %s222
          %s225 = sshll.u32 %s4, 4
          %s226 = int_to_ptr.vmem [resolvable:$true] %s225
          %228 = dma.vmem_to_smem %s226, 16, [#allocation14], [#allocation13]
        $region16: #{tpu_custom_call.1} parent=11 // pred_fallthru
          _
      $region12: #{tpu_custom_call.1} parent=5 // pred_fallthru
        _
      %p229 = scmp.lt.s32.totalorder %s31, 2
      // Predicated region
      $region17: #{tpu_custom_call.1} parent=5 // pred_check
        %p230 = pneg %p229
      $region18: #{tpu_custom_call.1} parent=5 // pred_check_branch
        %232 = sbr.rel (%p230) target = $region20
      $region19: #{tpu_custom_call.1} parent=5 // pred_region
        // Predicated region
        $region21: #{tpu_custom_call.1} parent=19 // pred_check
          %p233 = pneg %p51
        $region22: #{tpu_custom_call.1} parent=19 // pred_check_branch
          %235 = sbr.rel (%p233) target = $region24
        $region23: #{tpu_custom_call.1} parent=19 // pred_region
          %s236 = sand.u32 %s41, 1
          %s237 = scalar_lea.sflag [#allocation11], %s236
          %s238 = sand.u32 %s41, 1
          %s239 = smul.addr %s238, 8
          %s240 = scalar_lea.vmem [#allocation10], %s239
          %s242 = ssub.s32 128, 128
          %243 = vsyncadd %s237, %s242
          %s244 = smul.addr %s31, 2
          %s245 = smul.addr %s244, 64
          %s246 = scalar_lea.hbm %s3, %s245
          %s247 = sshll.u32 %s240, 4
          %s248 = int_to_ptr.vmem [resolvable:$true] %s247
          %253 = dma.hbm_to_vmem [thread:$0]  %s246, 128, %s248, %s237, 64, 64, 4
        $region24: #{tpu_custom_call.1} parent=19 // pred_fallthru
          _
        // Predicated region
        $region25: #{tpu_custom_call.1} parent=19 // pred_check
          %p254 = pneg %p98
        $region26: #{tpu_custom_call.1} parent=19 // pred_check_branch
          %256 = sbr.rel (%p254) target = $region28
        $region27: #{tpu_custom_call.1} parent=19 // pred_region
          %s257 = sand.u32 %s31, 1
          %s258 = scalar_lea.sflag [#allocation16], %s257
          %s259 = sand.u32 %s88, 1
          %s260 = smul.addr %s259, 64
          %s261 = scalar_lea.vmem [#allocation15], %s260
          %s263 = ssub.s32 1024, 1024
          %264 = vsyncadd %s258, %s263
          %s265 = smul.addr %s31, 16
          %s266 = smul.addr %s265, 64
          %s267 = scalar_lea.hbm %s5, %s266
          %s268 = sshll.u32 %s261, 4
          %s269 = int_to_ptr.vmem [resolvable:$true] %s268
          %274 = dma.hbm_to_vmem [thread:$0]  %s267, 1024, %s269, %s258, 64, 64, 4
        $region28: #{tpu_custom_call.1} parent=19 // pred_fallthru
          _
        // Predicated region
        $region29: #{tpu_custom_call.1} parent=19 // pred_check
          %p275 = pneg %p124
        $region30: #{tpu_custom_call.1} parent=19 // pred_check_branch
          %277 = sbr.rel (%p275) target = $region32
        $region31: #{tpu_custom_call.1} parent=19 // pred_region
          %p278 = scmp.lt.s32.totalorder %s31, 1
          %s279 = scalar_select %p278, %s31, 1
          %s280 = scalar_lea.vmem %s6, %s279
        $region32: #{tpu_custom_call.1} parent=19 // pred_fallthru
          _
        // Predicated region
        $region33: #{tpu_custom_call.1} parent=19 // pred_check
          %p281 = pneg %p150
        $region34: #{tpu_custom_call.1} parent=19 // pred_check_branch
          %283 = sbr.rel (%p281) target = $region36
        $region35: #{tpu_custom_call.1} parent=19 // pred_region
          %s284 = sand.u32 %s31, 1
          %s285 = scalar_lea.sflag [#allocation16], %s284
          %s286 = sand.u32 %s140, 1
          %s287 = smul.addr %s286, 64
          %s288 = scalar_lea.vmem [#allocation17], %s287
          %s290 = ssub.s32 1024, 1024
          %291 = vsyncadd %s285, %s290
          %s292 = smul.addr %s31, 16
          %s293 = smul.addr %s292, 64
          %s294 = scalar_lea.hbm %s7, %s293
          %s295 = sshll.u32 %s288, 4
          %s296 = int_to_ptr.vmem [resolvable:$true] %s295
          %301 = dma.hbm_to_vmem [thread:$0]  %s294, 1024, %s296, %s285, 64, 64, 4
        $region36: #{tpu_custom_call.1} parent=19 // pred_fallthru
          _
        // Predicated region
        $region37: #{tpu_custom_call.1} parent=19 // pred_check
          %p302 = pneg %p176
        $region38: #{tpu_custom_call.1} parent=19 // pred_check_branch
          %304 = sbr.rel (%p302) target = $region40
        $region39: #{tpu_custom_call.1} parent=19 // pred_region
          %p305 = scmp.lt.s32.totalorder %s31, 1
          %s306 = scalar_select %p305, %s31, 1
          %s307 = scalar_lea.vmem %s8, %s306
        $region40: #{tpu_custom_call.1} parent=19 // pred_fallthru
          _
      $region20: #{tpu_custom_call.1} parent=5 // pred_fallthru
        _
      %p308 = scmp.le.s32.totalorder 1, %s31
      %p309 = scmp.lt.s32.totalorder %s31, 3
      %p310 = pnand %p308, %p309
      %p311 = pneg %p310
      // Predicated region
      $region41: #{tpu_custom_call.1} parent=5 // pred_check
        _
      $region42: #{tpu_custom_call.1} parent=5 // pred_check_branch
        %313 = sbr.rel (%p310) target = $region44
      $region43: #{tpu_custom_call.1} parent=5 // pred_region
        %s314 = ssub.s32 %s31, 1
        %s315 = sand.u32 %s44, 1
        %s316 = scalar_lea.sflag [#allocation11], %s315
        %s317 = sand.u32 %s44, 1
        %s318 = smul.addr %s317, 8
        %s319 = scalar_lea.vmem [#allocation10], %s318
        // Predicated region
        $region45: #{tpu_custom_call.1} parent=43 // pred_check
          %p320 = pneg %p57
        $region46: #{tpu_custom_call.1} parent=43 // pred_check_branch
          %322 = sbr.rel (%p320) target = $region48
        $region47: #{tpu_custom_call.1} parent=43 // pred_region
          %323 = dma.done %s316, 128
        $region48: #{tpu_custom_call.1} parent=43 // pred_fallthru
          _
        // Predicated region
        $region49: #{tpu_custom_call.1} parent=43 // pred_check
          %p324 = pneg %p78
        $region50: #{tpu_custom_call.1} parent=43 // pred_check_branch
          %326 = sbr.rel (%p324) target = $region52
        $region51: #{tpu_custom_call.1} parent=43 // pred_region
          %327 = dma.done [#allocation13], 16
        $region52: #{tpu_custom_call.1} parent=43 // pred_fallthru
          _
        %s328 = sand.u32 %s36, 1
        %s329 = scalar_lea.sflag [#allocation16], %s328
        %s330 = sand.u32 %s91, 1
        %s331 = smul.addr %s330, 64
        %s332 = scalar_lea.vmem [#allocation15], %s331
        // Predicated region
        $region53: #{tpu_custom_call.1} parent=43 // pred_check
          %p333 = pneg %p104
        $region54: #{tpu_custom_call.1} parent=43 // pred_check_branch
          %335 = sbr.rel (%p333) target = $region56
        $region55: #{tpu_custom_call.1} parent=43 // pred_region
          %336 = dma.done %s329, 1024
        $region56: #{tpu_custom_call.1} parent=43 // pred_fallthru
          _
        %s337 = sand.u32 %s36, 1
        %s338 = scalar_lea.sflag [#allocation16], %s337
        %s339 = sand.u32 %s143, 1
        %s340 = smul.addr %s339, 64
        %s341 = scalar_lea.vmem [#allocation17], %s340
        // Predicated region
        $region57: #{tpu_custom_call.1} parent=43 // pred_check
          %p342 = pneg %p156
        $region58: #{tpu_custom_call.1} parent=43 // pred_check_branch
          %344 = sbr.rel (%p342) target = $region60
        $region59: #{tpu_custom_call.1} parent=43 // pred_region
          %345 = dma.done %s338, 1024
        $region60: #{tpu_custom_call.1} parent=43 // pred_fallthru
          _
        %346 = sfence
        %s347 = sand.u32 %s44, 1
        %s348 = scalar_lea.sflag [#allocation11], %s347
        %s349 = sand.u32 %s44, 1
        %s350 = smul.addr %s349, 8
        %s351 = scalar_lea.vmem [#allocation10], %s350
        %p352 = pneg %p57
        %p353 = pneg %p54
        %p354 = pneg %p78
        %p355 = pneg %p75
        %s356 = sand.u32 %s36, 1
        %s357 = scalar_lea.sflag [#allocation16], %s356
        %s358 = sand.u32 %s91, 1
        %s359 = smul.addr %s358, 64
        %s360 = scalar_lea.vmem [#allocation15], %s359
        %p361 = pneg %p104
        %p362 = pneg %p101
        %p363 = scmp.lt.s32.totalorder %s36, 1
        %s364 = scalar_select %p363, %s36, 1
        %s365 = scalar_lea.vmem %s6, %s364
        %p366 = pneg %p130
        %p367 = pneg %p127
        %s368 = sand.u32 %s36, 1
        %s369 = scalar_lea.sflag [#allocation16], %s368
        %s370 = sand.u32 %s143, 1
        %s371 = smul.addr %s370, 64
        %s372 = scalar_lea.vmem [#allocation17], %s371
        %p373 = pneg %p156
        %p374 = pneg %p153
        %p375 = scmp.lt.s32.totalorder %s36, 1
        %s376 = scalar_select %p375, %s36, 1
        %s377 = scalar_lea.vmem %s8, %s376
        %p378 = pneg %p182
        %p379 = pneg %p179
        %p380 = pneg %p203
        %p381 = pneg %p200
        %p382 = scmp.lt.s32.totalorder %s36, 1
        %s383 = scalar_select %p382, %s36, 1
        %s384 = scalar_lea.vmem %s6, %s383
        %p385 = scmp.lt.s32.totalorder %s36, 1
        %s386 = scalar_select %p385, %s36, 1
        %s387 = scalar_lea.vmem %s8, %s386
        %p389 = scmp.eq.s32.totalorder %s36, 0
        // Predicated region
        $region61: #{tpu_custom_call.1} parent=43 // pred_check
          %p390 = pneg %p389
        $region62: #{tpu_custom_call.1} parent=43 // pred_check_branch
          %392 = sbr.rel (%p390) target = $region64
        $region63: #{tpu_custom_call.1} parent=43 // pred_region
          // Predicated region
          $region65: #{tpu_custom_call.1} parent=63 // pred_check
            _
          $region66: #{tpu_custom_call.1} parent=63 // pred_check_branch
            %394 = sbr.rel target = $region68
          $region67: #{tpu_custom_call.1} parent=63 // pred_region
            %395 = sst [smem:[#allocation21]] [#allocation20]
            %396 = sst [smem:[#allocation22]] [#allocation19]
          $region68: #{tpu_custom_call.1} parent=63 // pred_fallthru
            _
          %398 = shalt.err (0)
          %s400 = sshll.u32 [#allocation2], 4
          %s401 = int_to_ptr.vmem [resolvable:$true] %s400
          %403 = dma.hbm_to_vmem [thread:$0]  %s2, 128, %s401, [#allocation6]
          %s404 = smul.u32 8, 1
          %s405 = sshll.u32 %s404, 4
          %406 = dma.done [#allocation6], %s405
        $region64: #{tpu_custom_call.1} parent=43 // pred_fallthru
          _
        %v407 = vld [vmem:[%s319] sm:$0xf]
        %v408 = vld [vmem:[%s319 + $0x4] sm:$0xf]
        %v409 = vunpack.c.l.bf16 %v407
        %v410 = vunpack.c.l.bf16 %v408
        %411 = vst [vmem:[#allocation4] sm:$0xff] %v409
        %412 = vst [vmem:[#allocation4 + $0x8] sm:$0xff] %v410
        %s413 = sld [smem:[#allocation14 + %s36]]
        loop: start=0, step=1, limit=8
        $region69: #{tpu_custom_call.1} parent=43 // loop_pre_header
          _
        $region70: #{tpu_custom_call.1} parent=43 // loop_header
          %s415 = sphi 0, %s419
          %p416 = scmp.ge.s32.totalorder %s415, 8
        $region71: #{tpu_custom_call.1} parent=43 // loop_header_branch
          %418 = sbr.rel (%p416) target = $region75
        $region72: #{tpu_custom_call.1} parent=43 // loop_body
          %s420 = sld [smem:[#allocation9 + %s415]]
          %s421 = sadd.s32 %s415, 1
          %s422 = sld [smem:[#allocation9 + %s421]]
          // While loop
          $region76: #{tpu_custom_call.1} parent=72 // loop_pre_header
            _
          $region77: #{tpu_custom_call.1} parent=72 // loop_header
            %s424 = sphi %s420, %s426
            %p425 = scmp.ge.s32.totalorder %s424, %s422
            %v429 = vphi 0.0, %v437
          $region78: #{tpu_custom_call.1} parent=72 // loop_header_branch
            %428 = sbr.rel (%p425) target = $region82
          $region79: #{tpu_custom_call.1} parent=72 // loop_body
            %s430 = sld [smem:[#allocation8 + %s424]]
            %s431 = scalar_lea.vmem [#allocation2], %s430
            %v432 = vld [vmem:[%s431] sm:$0x1]
            %s433 = scalar_lea.vmem [#allocation4], %s424
            %v434 = vld [vmem:[%s433] sm:$0x1]
            %v435 = vadd.f32 %v432, %v434
            %v436 = vmax.f32 %v435, 0.0
            %v437 = vadd.f32 %v429, %v436
          $region80: #{tpu_custom_call.1} parent=72 // loop_footer
            %s426 = sadd.s32 %s424, 1
          $region81: #{tpu_custom_call.1} parent=72 // loop_footer_branch
            %423 = sbr.rel target = $region77
          $region82: #{tpu_custom_call.1} parent=72 // loop_exit
            _
          %s438 = scalar_lea.vmem [#allocation2], %s415
          %v439 = vld [vmem:[%s438] sm:$0x1]
          %v440 = vstv %s413
          %v441 = vmul.f32 %v440, %v439
          %v442 = vadd.f32 %v441, %v429
          %s443 = scalar_lea.vmem [#allocation3], %s415
          %444 = vst [vmem:[%s443] sm:$0x1] %v442
        $region73: #{tpu_custom_call.1} parent=43 // loop_footer
          %s419 = sadd.s32 1, %s415
        $region74: #{tpu_custom_call.1} parent=43 // loop_footer_branch
          %414 = sbr.rel target = $region70
        $region75: #{tpu_custom_call.1} parent=43 // loop_exit
          _
        %v445 = vld [vmem:[#allocation3] sm:$0xff]
        %v446 = vpack.c.bf16 %v445, %v445
        %v447 = vld [vmem:[%s332] sm:$0xf]
        %v448 = vld [vmem:[%s332 + $0x4] sm:$0xf]
        %v449 = vld [vmem:[%s332 + $0x8] sm:$0xf]
        %v450 = vld [vmem:[%s332 + $0xc] sm:$0xf]
        %v451 = vld [vmem:[%s332 + $0x10] sm:$0xf]
        %v452 = vld [vmem:[%s332 + $0x14] sm:$0xf]
        %v453 = vld [vmem:[%s332 + $0x18] sm:$0xf]
        %v454 = vld [vmem:[%s332 + $0x1c] sm:$0xf]
        %v455 = vld [vmem:[%s332 + $0x20] sm:$0xf]
        %v456 = vld [vmem:[%s332 + $0x24] sm:$0xf]
        %v457 = vld [vmem:[%s332 + $0x28] sm:$0xf]
        %v458 = vld [vmem:[%s332 + $0x2c] sm:$0xf]
        %v459 = vld [vmem:[%s332 + $0x30] sm:$0xf]
        %v460 = vld [vmem:[%s332 + $0x34] sm:$0xf]
        %v461 = vld [vmem:[%s332 + $0x38] sm:$0xf]
        %v462 = vld [vmem:[%s332 + $0x3c] sm:$0xf]
        %v463 = vld [vmem:[%s384] sm:$0x1]
        %v465 = vlaneseq
        %v466 = vshrl.u32 %v465, 7
        %v467 = vsub.s32 0, %v466
        %v468 = vrot.slane %v463, %v467
        %v486 = vunpack.c.l.b16 %v447
        %v487 = vunpack.c.l.b16 %v448
        %v488 = vunpack.c.l.b16 %v449
        %v489 = vunpack.c.l.b16 %v450
        %v490 = vunpack.c.l.b16 %v451
        %v491 = vunpack.c.l.b16 %v452
        %v492 = vunpack.c.l.b16 %v453
        %v493 = vunpack.c.l.b16 %v454
        %v494 = vunpack.c.l.b16 %v455
        %v495 = vunpack.c.l.b16 %v456
        %v496 = vunpack.c.l.b16 %v457
        %v497 = vunpack.c.l.b16 %v458
        %v498 = vunpack.c.l.b16 %v459
        %v499 = vunpack.c.l.b16 %v460
        %v500 = vunpack.c.l.b16 %v461
        %v501 = vunpack.c.l.b16 %v462
        %v502 = vpack.c.b16 %v487, %v486
        %v503 = vpack.c.b16 %v489, %v488
        %v504 = vpack.c.b16 %v491, %v490
        %v505 = vpack.c.b16 %v493, %v492
        %v506 = vpack.c.b16 %v495, %v494
        %v507 = vpack.c.b16 %v497, %v496
        %v508 = vpack.c.b16 %v499, %v498
        %v509 = vpack.c.b16 %v501, %v500
        %518 = vmatprep.subr.bf16.mxu0 0
        %519 = vmatpush1.bf16.msra.mxu0 %v509
        %520 = vmatprep.subr.bf16.mxu0 0
        %521 = vmatpush1.bf16.msra.mxu0 %v508
        %522 = vmatprep.subr.bf16.mxu0 0
        %523 = vmatpush1.bf16.msra.mxu0 %v507
        %524 = vmatprep.subr.bf16.mxu0 0
        %525 = vmatpush1.bf16.msra.mxu0 %v506
        %526 = vmatprep.subr.bf16.mxu0 0
        %527 = vmatpush1.bf16.msra.mxu0 %v505
        %528 = vmatprep.subr.bf16.mxu0 0
        %529 = vmatpush1.bf16.msra.mxu0 %v504
        %530 = vmatprep.subr.bf16.mxu0 0
        %531 = vmatpush1.bf16.msra.mxu0 %v503
        %532 = vmatprep.subr.bf16.mxu0 0
        %533 = vmatpush1.bf16.msra.mxu0 %v502
        %534 = vmatprep.subr.bf16.mxu0 0
        %535 = vmatpush2.bf16.msra.mxu0 0
        %536 = vmatprep.subr.bf16.mxu0 0
        %537 = vmatpush2.bf16.msra.mxu0 0
        %538 = vmatprep.subr.bf16.mxu0 0
        %539 = vmatpush2.bf16.msra.mxu0 0
        %540 = vmatprep.subr.bf16.mxu0 0
        %541 = vmatpush2.bf16.msra.mxu0 0
        %542 = vmatprep.subr.bf16.mxu0 0
        %543 = vmatpush2.bf16.msra.mxu0 0
        %544 = vmatprep.subr.bf16.mxu0 0
        %545 = vmatpush2.bf16.msra.mxu0 0
        %546 = vmatprep.subr.bf16.mxu0 0
        %547 = vmatpush2.bf16.msra.mxu0 0
        %548 = vmatprep.subr.bf16.mxu0 0
        %549 = vmatpush2.bf16.msra.mxu0 0
        %550 = vmatprep.mubr.bf16.mxu0 0
        %551 = vmatmul.mubr.bf16.gmra.mxu0 %v446
        %v552 = vpop.f32.mrf.mxu0
        %v553 = vadd.f32 %v468, %v552
        %v554 = vpop.f32.mrf.mxu0
        %v555 = vpop.f32.mrf.mxu0
        %v556 = vpop.f32.mrf.mxu0
        %557 = vdwg.mxu0
        %v558 = vmax.f32 %v553, 0.0
        %v559 = vpack.c.bf16 %v558, %v558
        %v560 = vld [vmem:[%s341] sm:$0xf]
        %v561 = vld [vmem:[%s341 + $0x4] sm:$0xf]
        %v562 = vld [vmem:[%s341 + $0x8] sm:$0xf]
        %v563 = vld [vmem:[%s341 + $0xc] sm:$0xf]
        %v564 = vld [vmem:[%s341 + $0x10] sm:$0xf]
        %v565 = vld [vmem:[%s341 + $0x14] sm:$0xf]
        %v566 = vld [vmem:[%s341 + $0x18] sm:$0xf]
        %v567 = vld [vmem:[%s341 + $0x1c] sm:$0xf]
        %v568 = vld [vmem:[%s341 + $0x20] sm:$0xf]
        %v569 = vld [vmem:[%s341 + $0x24] sm:$0xf]
        %v570 = vld [vmem:[%s341 + $0x28] sm:$0xf]
        %v571 = vld [vmem:[%s341 + $0x2c] sm:$0xf]
        %v572 = vld [vmem:[%s341 + $0x30] sm:$0xf]
        %v573 = vld [vmem:[%s341 + $0x34] sm:$0xf]
        %v574 = vld [vmem:[%s341 + $0x38] sm:$0xf]
        %v575 = vld [vmem:[%s341 + $0x3c] sm:$0xf]
        %v576 = vld [vmem:[%s387] sm:$0x1]
        %v578 = vlaneseq
        %v579 = vshrl.u32 %v578, 7
        %v580 = vsub.s32 0, %v579
        %v581 = vrot.slane %v576, %v580
        %v599 = vunpack.c.l.b16 %v560
        %v600 = vunpack.c.l.b16 %v561
        %v601 = vunpack.c.l.b16 %v562
        %v602 = vunpack.c.l.b16 %v563
        %v603 = vunpack.c.l.b16 %v564
        %v604 = vunpack.c.l.b16 %v565
        %v605 = vunpack.c.l.b16 %v566
        %v606 = vunpack.c.l.b16 %v567
        %v607 = vunpack.c.l.b16 %v568
        %v608 = vunpack.c.l.b16 %v569
        %v609 = vunpack.c.l.b16 %v570
        %v610 = vunpack.c.l.b16 %v571
        %v611 = vunpack.c.l.b16 %v572
        %v612 = vunpack.c.l.b16 %v573
        %v613 = vunpack.c.l.b16 %v574
        %v614 = vunpack.c.l.b16 %v575
        %v615 = vpack.c.b16 %v600, %v599
        %v616 = vpack.c.b16 %v602, %v601
        %v617 = vpack.c.b16 %v604, %v603
        %v618 = vpack.c.b16 %v606, %v605
        %v619 = vpack.c.b16 %v608, %v607
        %v620 = vpack.c.b16 %v610, %v609
        %v621 = vpack.c.b16 %v612, %v611
        %v622 = vpack.c.b16 %v614, %v613
        %631 = vmatprep.subr.bf16.mxu0 0
        %632 = vmatpush1.bf16.msra.mxu0 %v622
        %633 = vmatprep.subr.bf16.mxu0 0
        %634 = vmatpush1.bf16.msra.mxu0 %v621
        %635 = vmatprep.subr.bf16.mxu0 0
        %636 = vmatpush1.bf16.msra.mxu0 %v620
        %637 = vmatprep.subr.bf16.mxu0 0
        %638 = vmatpush1.bf16.msra.mxu0 %v619
        %639 = vmatprep.subr.bf16.mxu0 0
        %640 = vmatpush1.bf16.msra.mxu0 %v618
        %641 = vmatprep.subr.bf16.mxu0 0
        %642 = vmatpush1.bf16.msra.mxu0 %v617
        %643 = vmatprep.subr.bf16.mxu0 0
        %644 = vmatpush1.bf16.msra.mxu0 %v616
        %645 = vmatprep.subr.bf16.mxu0 0
        %646 = vmatpush1.bf16.msra.mxu0 %v615
        %647 = vmatprep.subr.bf16.mxu0 0
        %648 = vmatpush2.bf16.msra.mxu0 0
        %649 = vmatprep.subr.bf16.mxu0 0
        %650 = vmatpush2.bf16.msra.mxu0 0
        %651 = vmatprep.subr.bf16.mxu0 0
        %652 = vmatpush2.bf16.msra.mxu0 0
        %653 = vmatprep.subr.bf16.mxu0 0
        %654 = vmatpush2.bf16.msra.mxu0 0
        %655 = vmatprep.subr.bf16.mxu0 0
        %656 = vmatpush2.bf16.msra.mxu0 0
        %657 = vmatprep.subr.bf16.mxu0 0
        %658 = vmatpush2.bf16.msra.mxu0 0
        %659 = vmatprep.subr.bf16.mxu0 0
        %660 = vmatpush2.bf16.msra.mxu0 0
        %661 = vmatprep.subr.bf16.mxu0 0
        %662 = vmatpush2.bf16.msra.mxu0 0
        %663 = vmatprep.mubr.bf16.mxu0 0
        %664 = vmatmul.mubr.bf16.gmra.mxu0 %v559
        %v665 = vpop.f32.mrf.mxu0
        %v666 = vadd.f32 %v581, %v665
        %v667 = vpop.f32.mrf.mxu0
        %v668 = vpop.f32.mrf.mxu0
        %v669 = vpop.f32.mrf.mxu0
        %670 = vdwg.mxu0
        %p671 = scmp.ne.s32.totalorder %s36, 1
        // Predicated region
        $region83: #{tpu_custom_call.1} parent=43 // pred_check
          %p672 = pneg %p671
        $region84: #{tpu_custom_call.1} parent=43 // pred_check_branch
          %674 = sbr.rel (%p672) target = $region86
        $region85: #{tpu_custom_call.1} parent=43 // pred_region
          %v675 = vmax.f32 %v666, 0.0
          %676 = vst [vmem:[#allocation2] sm:$0xff] %v675
        $region86: #{tpu_custom_call.1} parent=43 // pred_fallthru
          _
        %p677 = scmp.eq.s32.totalorder %s36, 1
        // Predicated region
        $region87: #{tpu_custom_call.1} parent=43 // pred_check
          %p678 = pneg %p677
        $region88: #{tpu_custom_call.1} parent=43 // pred_check_branch
          %680 = sbr.rel (%p678) target = $region90
        $region89: #{tpu_custom_call.1} parent=43 // pred_region
          %681 = vst [vmem:[#allocation18] sm:$0xff] %v666
        $region90: #{tpu_custom_call.1} parent=43 // pred_fallthru
          _
        // Predicated region
        $region91: #{tpu_custom_call.1} parent=43 // pred_check
          %p682 = pneg %p200
        $region92: #{tpu_custom_call.1} parent=43 // pred_check_branch
          %684 = sbr.rel (%p682) target = $region94
        $region93: #{tpu_custom_call.1} parent=43 // pred_region
          %s686 = ssub.s32 128, 128
          %687 = vsyncadd [#allocation12], %s686
          %s689 = sshll.u32 [#allocation18], 4
          %s690 = int_to_ptr.vmem [resolvable:$true] %s689
          %692 = dma.vmem_to_hbm [thread:$0]  %s690, 128, %s9, [#allocation12]
        $region94: #{tpu_custom_call.1} parent=43 // pred_fallthru
          _
        // Predicated region
        $region95: #{tpu_custom_call.1} parent=43 // pred_check
          %p693 = pneg %p200
        $region96: #{tpu_custom_call.1} parent=43 // pred_check_branch
          %695 = sbr.rel (%p693) target = $region98
        $region97: #{tpu_custom_call.1} parent=43 // pred_region
          %696 = dma.done [#allocation12], 128
        $region98: #{tpu_custom_call.1} parent=43 // pred_fallthru
          _
      $region44: #{tpu_custom_call.1} parent=5 // pred_fallthru
        _
      %p697 = scmp.le.s32.totalorder 2, %s31
      // Predicated region
      $region99: #{tpu_custom_call.1} parent=5 // pred_check
        %p698 = pneg %p697
      $region100: #{tpu_custom_call.1} parent=5 // pred_check_branch
        %700 = sbr.rel (%p698) target = $region102
      $region101: #{tpu_custom_call.1} parent=5 // pred_region
        %s701 = ssub.s32 %s31, 2
      $region102: #{tpu_custom_call.1} parent=5 // pred_fallthru
        _
    $region6: #{tpu_custom_call.1} parent=1 // loop_footer
      %s35 = sadd.s32 1, %s31
    $region7: #{tpu_custom_call.1} parent=1 // loop_footer_branch
      %30 = sbr.rel target = $region3
    $region8: #{tpu_custom_call.1} parent=1 // loop_exit
      _
    %702 = vsyncpa [#allocation11], 1
    %s703 = scalar_lea.sflag [#allocation11], 1
    %704 = vsyncpa %s703, 1
    %705 = vsyncpa [#allocation16], 1
    %s706 = scalar_lea.sflag [#allocation16], 1
    %707 = vsyncpa %s706, 1
    %708 = vsyncpa [#allocation12], 1
    %s709 = scalar_lea.sflag [#allocation12], 1
    %710 = vsyncpa %s709, 1
    %711 = vsyncpa [#allocation13], 1
    %s712 = scalar_lea.sflag [#allocation13], 1
    %713 = vsyncpa %s712, 1
  %714 = vsyncmov [#allocation6]
  %s715 = vpop.sfrf %714
  %p716 = scmp.eq.s32.totalorder %s715, 0
  %p717 = pneg %p716
  %719 = shalt.err (%p717)

</llo_original>
